<compile_context>
chip_gen: v5e
topology: v5e:2x2
jax: 0.10.0
libtpu: 0.0.40
codegen_flags: <defaults>
</compile_context>

<pallas_src>
import jax
import jax.numpy as jnp
from jax.experimental import pallas as pl
from jax.experimental.pallas import tpu as pltpu


def _round_up(x, m):
    return ((x + m - 1) // m) * m


# ---------------------------------------------------------------------------
# Kernel 1: attention + LSTM cell + p_gen (small operands, no grid)
# ---------------------------------------------------------------------------
def _context_kernel(
    x_emb_ref,    # (B, E)      f32   embedded (dropout == identity) input token
    enc_out_ref,  # (B, S, H)   f32   encoder outputs
    h0_ref,       # (B, H)      f32   decoder hidden (layer 0)
    c0_ref,       # (B, H)      f32   decoder cell   (layer 0)
    v_w_ref,      # (1, H)      f32   V: Linear(H,1) weight (row vector)
    v_b_ref,      # (1, 1)      f32
    w_ih_ref,     # (E+H, 4H)   f32   LSTM W_ih^T  (gate order i, f, g, o)
    w_hh_ref,     # (H, 4H)     f32   LSTM W_hh^T
    b_ref,        # (1, 4H)     f32   b_ih + b_hh (combined in wrapper)
    gen_w_ref,    # (2H+E, 1)   f32   generator Linear(2H+E, 1)^T
    gen_b_ref,    # (1, 1)      f32
    # outputs
    h1_ref,       # (B, H)      f32
    c1_ref,       # (B, H)      f32
    encw_ref,     # (B, S)      f32   attention weights (softmax over S)
    pgen_ref,     # (B, 1)      f32
    outact_ref,   # (B, 2H)     bf16  [h1, enc_context] -> fed to vocab matmul
):
    H = h0_ref.shape[1]
    f32 = jnp.float32

    x_emb = x_emb_ref[...]
    enc_out = enc_out_ref[...]
    h0 = h0_ref[...]
    c0 = c0_ref[...]

    # ---- additive attention: V(tanh(enc_out + dec_a)), softmax over S ----
    t = jnp.tanh(enc_out + h0[:, None, :])                        # (B, S, H)
    score = jnp.sum(t * v_w_ref[...], axis=-1) + v_b_ref[0, 0]    # (B, S)
    m = jnp.max(score, axis=1, keepdims=True)
    e = jnp.exp(score - m)
    # EUP approx reciprocal for the softmax denominator (free slot).
    enc_weight = e * pl.reciprocal(jnp.sum(e, axis=1, keepdims=True), approx=True)
    enc_context = jnp.sum(enc_weight[:, :, None] * enc_out, axis=1)   # (B, H)

    # ---- single-step, single-layer LSTM cell on [x_emb, enc_context] ----
    d_in = jnp.concatenate([x_emb, enc_context], axis=1)          # (B, E+H)
    gates = (
        jnp.dot(d_in, w_ih_ref[...], preferred_element_type=f32)
        + jnp.dot(h0, w_hh_ref[...], preferred_element_type=f32)
        + b_ref[...]
    )                                                             # (B, 4H)
    i_g = jax.nn.sigmoid(gates[:, 0:H])
    f_g = jax.nn.sigmoid(gates[:, H:2 * H])
    g_g = jnp.tanh(gates[:, 2 * H:3 * H])
    o_g = jax.nn.sigmoid(gates[:, 3 * H:4 * H])
    c1 = f_g * c0 + i_g * g_g
    h1 = o_g * jnp.tanh(c1)                                       # d_output (B, H)

    # ---- p_gen = sigmoid(generator([enc_context, d_output, x_emb])) ----
    og = jnp.concatenate([enc_context, h1, x_emb], axis=1)        # (B, 2H+E)
    p_gen = jax.nn.sigmoid(
        jnp.dot(og, gen_w_ref[...], preferred_element_type=f32) + gen_b_ref[...]
    )                                                             # (B, 1)

    h1_ref[...] = h1
    c1_ref[...] = c1
    encw_ref[...] = enc_weight
    pgen_ref[...] = p_gen
    outact_ref[...] = jnp.concatenate([h1, enc_context], axis=1).astype(outact_ref.dtype)


# ---------------------------------------------------------------------------
# Kernel 2: vocab-tiled output layer + pointer/generator mix (grid over V)
# ---------------------------------------------------------------------------
def _vocab_kernel(
    outact_ref,   # (B, 2H)  bf16   resident across all vocab tiles
    pgen_ref,     # (B, 1)   f32
    encw_ref,     # (B, S)   f32
    text_ref,     # (B, S)   int32  source token ids
    out_w_ref,    # (2H, TV) bf16   streamed tile of output_layer weight^T
    out_b_ref,    # (1, TV)  f32
    prob_ref,     # (B, TV)  f32
):
    B, TV = prob_ref.shape
    S = text_ref.shape[1]

    # generator logits for this vocab tile: bf16 MXU matmul, f32 accumulation
    gen_tile = (
        jnp.dot(outact_ref[...], out_w_ref[...], preferred_element_type=jnp.float32)
        + out_b_ref[...]
    )                                                             # (B, TV)

    # pointer_prob[i, text[i, j]] = enc_weight[i, j]  (last write wins),
    # restricted to this vocab tile.
    base = pl.program_id(0) * TV
    vocab_ids = base + jax.lax.broadcasted_iota(jnp.int32, (B, TV), 1)

    def body(j, ptr):
        tok = text_ref[:, pl.ds(j, 1)]      # (B, 1) int32
        w = encw_ref[:, pl.ds(j, 1)]        # (B, 1) f32
        return jnp.where(tok == vocab_ids, w, ptr)

    pointer_prob = jax.lax.fori_loop(
        0, S, body, jnp.zeros((B, TV), jnp.float32), unroll=2)

    p_gen = pgen_ref[...]                                         # (B, 1)
    prob_ref[...] = (1.0 - p_gen) * pointer_prob + p_gen * gen_tile


# ---------------------------------------------------------------------------
# Wrapper
# ---------------------------------------------------------------------------
def attention_decoder_forward(x_tok, enc_out, hidden, text, params):
    """One forward step of AttentionDecoder.  Returns (output_probability, (h, c))."""
    h0_l, c0_l = hidden                    # (layers=1, B, H)
    B, S, H = enc_out.shape
    V = params["out_b"].shape[1]

    # glue: embedding lookup + (eval-mode) dropout == identity
    x_emb = params["embedding"][x_tok].astype(jnp.float32)    # (B, E)
    h0 = h0_l[0]                           # dec_a = hidden[0].permute(1,0,2), layers=1
    c0 = c0_l[0]
    # TODO(synk): only layers == 1 of the LSTM stack is implemented (matches test config).

    vmem = pl.BlockSpec(memory_space=pltpu.MemorySpace.VMEM)
    b_comb = params["b_ih"] + params["b_hh"]                  # (1, 4H)

    h1, c1, enc_w, p_gen, out_act = pl.pallas_call(
        _context_kernel,
        out_shape=(
            jax.ShapeDtypeStruct((B, H), jnp.float32),
            jax.ShapeDtypeStruct((B, H), jnp.float32),
            jax.ShapeDtypeStruct((B, S), jnp.float32),
            jax.ShapeDtypeStruct((B, 1), jnp.float32),
            jax.ShapeDtypeStruct((B, 2 * H), jnp.bfloat16),
        ),
        in_specs=[vmem] * 11,
        out_specs=(vmem, vmem, vmem, vmem, vmem),
        compiler_params=pltpu.CompilerParams(vmem_limit_bytes=64 * 1024 * 1024),
    )(
        x_emb, enc_out, h0, c0,
        params["v_w"], params["v_b"],
        params["w_ih"], params["w_hh"], b_comb,
        params["gen_w"], params["gen_b"],
    )

    # ---- vocab-tiled output_layer + mix ----
    # Lane-dense tiles: TV a multiple of 128; pad V up so the grid divides evenly.
    TV = 1024 if V >= 1024 else _round_up(V, 128)
    Vp = _round_up(V, TV)
    out_w = params["out_w"].astype(jnp.bfloat16)              # (2H, V) — dominant HBM stream
    out_b = params["out_b"].astype(jnp.float32)
    if Vp != V:
        out_w = jnp.pad(out_w, ((0, 0), (0, Vp - V)))
        out_b = jnp.pad(out_b, ((0, 0), (0, Vp - V)))
    n_tiles = Vp // TV

    prob = pl.pallas_call(
        _vocab_kernel,
        grid=(n_tiles,),
        out_shape=jax.ShapeDtypeStruct((B, Vp), jnp.float32),
        in_specs=[
            pl.BlockSpec((B, 2 * H), lambda v: (0, 0)),
            pl.BlockSpec((B, 1), lambda v: (0, 0)),
            pl.BlockSpec((B, S), lambda v: (0, 0)),
            pl.BlockSpec((B, S), lambda v: (0, 0)),
            pl.BlockSpec((2 * H, TV), lambda v: (0, v)),      # streamed weight tile
            pl.BlockSpec((1, TV), lambda v: (0, v)),
        ],
        out_specs=pl.BlockSpec((B, TV), lambda v: (0, v)),
        compiler_params=pltpu.CompilerParams(
            dimension_semantics=("parallel",),                # vocab tiles → both TCs on v7x
            vmem_limit_bytes=64 * 1024 * 1024,
        ),
    )(out_act, p_gen, enc_w, text, out_w, out_b)

    if Vp != V:
        prob = prob[:, :V]
    return prob, (h1[None], c1[None])


# ---------------------------------------------------------------------------
# Pure-JAX reference (mirrors the PyTorch forward, f32) for correctness checking
# ---------------------------------------------------------------------------
def reference_forward(x_tok, enc_out, hidden, text, params):
    h0 = hidden[0][0]
    c0 = hidden[1][0]
    B, S, H = enc_out.shape
    V = params["out_b"].shape[1]

    x_emb = params["embedding"][x_tok]
    t = jnp.tanh(enc_out + h0[:, None, :])
    score = jnp.einsum("bsh,h->bs", t, params["v_w"][0]) + params["v_b"][0, 0]
    enc_weight = jax.nn.softmax(score, axis=1)
    enc_context = jnp.sum(enc_weight[:, :, None] * enc_out, axis=1)

    d_in = jnp.concatenate([x_emb, enc_context], axis=1)
    gates = d_in @ params["w_ih"] + h0 @ params["w_hh"] + params["b_ih"][0] + params["b_hh"][0]
    i_g = jax.nn.sigmoid(gates[:, 0:H])
    f_g = jax.nn.sigmoid(gates[:, H:2 * H])
    g_g = jnp.tanh(gates[:, 2 * H:3 * H])
    o_g = jax.nn.sigmoid(gates[:, 3 * H:4 * H])
    c1 = f_g * c0 + i_g * g_g
    h1 = o_g * jnp.tanh(c1)

    og = jnp.concatenate([enc_context, h1, x_emb], axis=1)
    p_gen = jax.nn.sigmoid(og @ params["gen_w"] + params["gen_b"][0])        # (B, 1)
    output = jnp.concatenate([h1, enc_context], axis=1)
    generator_prob = output @ params["out_w"] + params["out_b"][0]

    vocab_ids = jnp.arange(V)[None, :]
    pointer_prob = jnp.zeros((B, V), jnp.float32)
    for j in range(S):
        pointer_prob = jnp.where(text[:, j:j + 1] == vocab_ids,
                                 enc_weight[:, j:j + 1], pointer_prob)

    out_prob = (1.0 - p_gen) * pointer_prob + p_gen * generator_prob
    return out_prob, (h1[None], c1[None])


# ---------------------------------------------------------------------------
if __name__ == "__main__":
    B, S, H, E, V, LAYERS = 2, 8, 32, 16, 64, 1

    key = jax.random.PRNGKey(0)
    ks = jax.random.split(key, 16)

    def rnd(k, shape, scale=0.1):
        return (scale * jax.random.normal(k, shape)).astype(jnp.float32)

    params = {
        "embedding": rnd(ks[0], (V, E), 1.0),       # frozen weight_matrix
        "v_w": rnd(ks[1], (1, H)),                  # Linear(H, 1)
        "v_b": rnd(ks[2], (1, 1)),
        "w_ih": rnd(ks[3], (E + H, 4 * H)),         # LSTM W_ih^T (i, f, g, o)
        "w_hh": rnd(ks[4], (H, 4 * H)),             # LSTM W_hh^T
        "b_ih": rnd(ks[5], (1, 4 * H)),
        "b_hh": rnd(ks[6], (1, 4 * H)),
        "gen_w": rnd(ks[7], (2 * H + E, 1)),        # Linear(2H+E, 1)^T
        "gen_b": rnd(ks[8], (1, 1)),
        "out_w": rnd(ks[9], (2 * H, V)),            # Linear(2H, V)^T
        "out_b": rnd(ks[10], (1, V)),
    }

    x_tok = jax.random.randint(ks[11], (B,), 0, V, dtype=jnp.int32)
    enc_out = rnd(ks[12], (B, S, H), 1.0)
    h0 = rnd(ks[13], (LAYERS, B, H), 1.0)
    c0 = rnd(ks[14], (LAYERS, B, H), 1.0)
    text = jax.random.randint(ks[15], (B, S), 0, V, dtype=jnp.int32)

    prob, (h1, c1) = attention_decoder_forward(x_tok, enc_out, (h0, c0), text, params)
    jax.block_until_ready((prob, h1, c1))

    ref_prob, (ref_h1, ref_c1) = reference_forward(x_tok, enc_out, (h0, c0), text, params)
    assert prob.shape == (B, V) and h1.shape == (LAYERS, B, H) and c1.shape == (LAYERS, B, H)
    # bf16 weight streaming + approx reciprocal -> relaxed tolerances vs. the f32 reference
    assert jnp.allclose(prob, ref_prob, atol=1e-2, rtol=1e-2)
    assert jnp.allclose(h1, ref_h1, atol=1e-2, rtol=1e-2)
    assert jnp.allclose(c1, ref_c1, atol=1e-2, rtol=1e-2)

    print("KERNEL_OK")
</pallas_src>

<mosaic_0001>
module attributes {stable_mosaic.version = 11 : i64} {
  func.func @_context_kernel(%arg0: memref<2x16xf32, #tpu.memory_space<vmem>>, %arg1: memref<2x8x32xf32, #tpu.memory_space<vmem>>, %arg2: memref<2x32xf32, #tpu.memory_space<vmem>>, %arg3: memref<2x32xf32, #tpu.memory_space<vmem>>, %arg4: memref<1x32xf32, #tpu.memory_space<vmem>>, %arg5: memref<1x1xf32, #tpu.memory_space<vmem>>, %arg6: memref<48x128xf32, #tpu.memory_space<vmem>>, %arg7: memref<32x128xf32, #tpu.memory_space<vmem>>, %arg8: memref<1x128xf32, #tpu.memory_space<vmem>>, %arg9: memref<80x1xf32, #tpu.memory_space<vmem>>, %arg10: memref<1x1xf32, #tpu.memory_space<vmem>>, %arg11: memref<2x32xf32, #tpu.memory_space<vmem>>, %arg12: memref<2x32xf32, #tpu.memory_space<vmem>>, %arg13: memref<2x8xf32, #tpu.memory_space<vmem>>, %arg14: memref<2x1xf32, #tpu.memory_space<vmem>>, %arg15: memref<2x64xbf16, #tpu.memory_space<vmem>>) attributes {dimension_semantics = [], scalar_prefetch = 0 : i64, scratch_operands = 0 : i64, tpu.core_type = #tpu.core_type<tc>} {
    %c0 = arith.constant 0 : index
    %c0_0 = arith.constant 0 : index
    %0 = vector.load %arg0[%c0, %c0_0] : memref<2x16xf32, #tpu.memory_space<vmem>>, vector<2x16xf32>
    %c0_1 = arith.constant 0 : index
    %c0_2 = arith.constant 0 : index
    %c0_3 = arith.constant 0 : index
    %1 = vector.load %arg1[%c0_1, %c0_2, %c0_3] : memref<2x8x32xf32, #tpu.memory_space<vmem>>, vector<2x8x32xf32>
    %c0_4 = arith.constant 0 : index
    %c0_5 = arith.constant 0 : index
    %2 = vector.load %arg2[%c0_4, %c0_5] : memref<2x32xf32, #tpu.memory_space<vmem>>, vector<2x32xf32>
    %c0_6 = arith.constant 0 : index
    %c0_7 = arith.constant 0 : index
    %3 = vector.load %arg3[%c0_6, %c0_7] : memref<2x32xf32, #tpu.memory_space<vmem>>, vector<2x32xf32>
    %4 = vector.shape_cast %2 : vector<2x32xf32> to vector<2x1x32xf32>
    %5 = vector.broadcast %4 : vector<2x1x32xf32> to vector<2x8x32xf32>
    %6 = arith.addf %1, %5 : vector<2x8x32xf32>
    %7 = math.tanh %6 : vector<2x8x32xf32>
    %c0_8 = arith.constant 0 : index
    %c0_9 = arith.constant 0 : index
    %8 = vector.load %arg4[%c0_8, %c0_9] : memref<1x32xf32, #tpu.memory_space<vmem>>, vector<1x32xf32>
    %9 = vector.shape_cast %8 : vector<1x32xf32> to vector<1x1x32xf32>
    %10 = vector.broadcast %9 : vector<1x1x32xf32> to vector<2x8x32xf32>
    %11 = arith.mulf %7, %10 : vector<2x8x32xf32>
    %cst = arith.constant dense<0.000000e+00> : vector<2x8xf32>
    %12 = vector.multi_reduction <add>, %11, %cst [2] : vector<2x8x32xf32> to vector<2x8xf32>
    %c0_10 = arith.constant 0 : index
    %c0_11 = arith.constant 0 : index
    %13 = vector.load %arg5[%c0_10, %c0_11] : memref<1x1xf32, #tpu.memory_space<vmem>>, vector<1x1xf32>
    %14 = vector.extract %13[0, 0] : f32 from vector<1x1xf32>
    %15 = vector.broadcast %14 : f32 to vector<2x8xf32>
    %16 = arith.addf %12, %15 : vector<2x8xf32>
    %cst_12 = arith.constant dense<0xFF800000> : vector<2xf32>
    %17 = vector.multi_reduction <maximumf>, %16, %cst_12 [1] : vector<2x8xf32> to vector<2xf32>
    %18 = vector.shape_cast %17 : vector<2xf32> to vector<2x1xf32>
    %19 = vector.broadcast %18 : vector<2x1xf32> to vector<2x8xf32>
    %20 = arith.subf %16, %19 : vector<2x8xf32>
    %21 = math.exp %20 : vector<2x8xf32>
    %cst_13 = arith.constant dense<0.000000e+00> : vector<2xf32>
    %22 = vector.multi_reduction <add>, %21, %cst_13 [1] : vector<2x8xf32> to vector<2xf32>
    %23 = vector.shape_cast %22 : vector<2xf32> to vector<2x1xf32>
    %24 = tpu.reciprocal %23 {approx = true} : vector<2x1xf32> -> vector<2x1xf32>
    %25 = vector.broadcast %24 : vector<2x1xf32> to vector<2x8xf32>
    %26 = arith.mulf %21, %25 : vector<2x8xf32>
    %27 = vector.shape_cast %26 : vector<2x8xf32> to vector<2x8x1xf32>
    %28 = vector.broadcast %27 : vector<2x8x1xf32> to vector<2x8x32xf32>
    %29 = arith.mulf %28, %1 : vector<2x8x32xf32>
    %cst_14 = arith.constant dense<0.000000e+00> : vector<2x32xf32>
    %30 = vector.multi_reduction <add>, %29, %cst_14 [1] : vector<2x8x32xf32> to vector<2x32xf32>
    %31 = tpu.concatenate %0, %30 in 1 : vector<2x16xf32>, vector<2x32xf32> -> vector<2x48xf32>
    %c0_15 = arith.constant 0 : index
    %c0_16 = arith.constant 0 : index
    %32 = vector.load %arg6[%c0_15, %c0_16] : memref<48x128xf32, #tpu.memory_space<vmem>>, vector<48x128xf32>
    %cst_17 = arith.constant dense<0.000000e+00> : vector<2x128xf32>
    %33 = tpu.matmul %31, %32, %cst_17 {dimension_numbers = #tpu.dot_dimension_numbers<[1], [0], [0], [1], [0, 0, 1, 1], [], []>} : vector<2x48xf32>, vector<48x128xf32>, vector<2x128xf32> -> vector<2x128xf32>
    %c0_18 = arith.constant 0 : index
    %c0_19 = arith.constant 0 : index
    %34 = vector.load %arg7[%c0_18, %c0_19] : memref<32x128xf32, #tpu.memory_space<vmem>>, vector<32x128xf32>
    %cst_20 = arith.constant dense<0.000000e+00> : vector<2x128xf32>
    %35 = tpu.matmul %2, %34, %cst_20 {dimension_numbers = #tpu.dot_dimension_numbers<[1], [0], [0], [1], [0, 0, 1, 1], [], []>} : vector<2x32xf32>, vector<32x128xf32>, vector<2x128xf32> -> vector<2x128xf32>
    %36 = arith.addf %33, %35 : vector<2x128xf32>
    %c0_21 = arith.constant 0 : index
    %c0_22 = arith.constant 0 : index
    %37 = vector.load %arg8[%c0_21, %c0_22] : memref<1x128xf32, #tpu.memory_space<vmem>>, vector<1x128xf32>
    %38 = vector.broadcast %37 : vector<1x128xf32> to vector<2x128xf32>
    %39 = arith.addf %36, %38 : vector<2x128xf32>
    %40 = vector.extract_strided_slice %39 {offsets = [0, 0], sizes = [2, 32], strides = [1, 1]} : vector<2x128xf32> to vector<2x32xf32>
    %41 = arith.negf %40 : vector<2x32xf32>
    %42 = math.exp %41 : vector<2x32xf32>
    %cst_23 = arith.constant 1.000000e+00 : f32
    %43 = vector.broadcast %cst_23 : f32 to vector<2x32xf32>
    %44 = arith.addf %43, %42 : vector<2x32xf32>
    %45 = arith.divf %43, %44 : vector<2x32xf32>
    %46 = vector.extract_strided_slice %39 {offsets = [0, 32], sizes = [2, 32], strides = [1, 1]} : vector<2x128xf32> to vector<2x32xf32>
    %47 = arith.negf %46 : vector<2x32xf32>
    %48 = math.exp %47 : vector<2x32xf32>
    %cst_24 = arith.constant 1.000000e+00 : f32
    %49 = vector.broadcast %cst_24 : f32 to vector<2x32xf32>
    %50 = arith.addf %49, %48 : vector<2x32xf32>
    %51 = arith.divf %49, %50 : vector<2x32xf32>
    %52 = vector.extract_strided_slice %39 {offsets = [0, 64], sizes = [2, 32], strides = [1, 1]} : vector<2x128xf32> to vector<2x32xf32>
    %53 = math.tanh %52 : vector<2x32xf32>
    %54 = vector.extract_strided_slice %39 {offsets = [0, 96], sizes = [2, 32], strides = [1, 1]} : vector<2x128xf32> to vector<2x32xf32>
    %55 = arith.negf %54 : vector<2x32xf32>
    %56 = math.exp %55 : vector<2x32xf32>
    %cst_25 = arith.constant 1.000000e+00 : f32
    %57 = vector.broadcast %cst_25 : f32 to vector<2x32xf32>
    %58 = arith.addf %57, %56 : vector<2x32xf32>
    %59 = arith.divf %57, %58 : vector<2x32xf32>
    %60 = arith.mulf %51, %3 : vector<2x32xf32>
    %61 = arith.mulf %45, %53 : vector<2x32xf32>
    %62 = arith.addf %60, %61 : vector<2x32xf32>
    %63 = math.tanh %62 : vector<2x32xf32>
    %64 = arith.mulf %59, %63 : vector<2x32xf32>
    %65 = tpu.concatenate %30, %64, %0 in 1 : vector<2x32xf32>, vector<2x32xf32>, vector<2x16xf32> -> vector<2x80xf32>
    %c0_26 = arith.constant 0 : index
    %c0_27 = arith.constant 0 : index
    %66 = vector.load %arg9[%c0_26, %c0_27] : memref<80x1xf32, #tpu.memory_space<vmem>>, vector<80x1xf32>
    %cst_28 = arith.constant dense<0.000000e+00> : vector<2x1xf32>
    %67 = tpu.matmul %65, %66, %cst_28 {dimension_numbers = #tpu.dot_dimension_numbers<[1], [0], [0], [1], [0, 0, 1, 1], [], []>} : vector<2x80xf32>, vector<80x1xf32>, vector<2x1xf32> -> vector<2x1xf32>
    %c0_29 = arith.constant 0 : index
    %c0_30 = arith.constant 0 : index
    %68 = vector.load %arg10[%c0_29, %c0_30] : memref<1x1xf32, #tpu.memory_space<vmem>>, vector<1x1xf32>
    %69 = vector.broadcast %68 : vector<1x1xf32> to vector<2x1xf32>
    %70 = arith.addf %67, %69 : vector<2x1xf32>
    %71 = arith.negf %70 : vector<2x1xf32>
    %72 = math.exp %71 : vector<2x1xf32>
    %cst_31 = arith.constant 1.000000e+00 : f32
    %73 = vector.broadcast %cst_31 : f32 to vector<2x1xf32>
    %74 = arith.addf %73, %72 : vector<2x1xf32>
    %75 = arith.divf %73, %74 : vector<2x1xf32>
    %c0_32 = arith.constant 0 : index
    %c0_33 = arith.constant 0 : index
    %76 = vector.load %arg11[%c0_32, %c0_33] : memref<2x32xf32, #tpu.memory_space<vmem>>, vector<2x32xf32>
    tpu.vector_store %arg11[%c0_32, %c0_33], %64 {strides = array<i32>} : memref<2x32xf32, #tpu.memory_space<vmem>>, vector<2x32xf32>,
    %c0_34 = arith.constant 0 : index
    %c0_35 = arith.constant 0 : index
    %77 = vector.load %arg12[%c0_34, %c0_35] : memref<2x32xf32, #tpu.memory_space<vmem>>, vector<2x32xf32>
    tpu.vector_store %arg12[%c0_34, %c0_35], %62 {strides = array<i32>} : memref<2x32xf32, #tpu.memory_space<vmem>>, vector<2x32xf32>,
    %c0_36 = arith.constant 0 : index
    %c0_37 = arith.constant 0 : index
    %78 = vector.load %arg13[%c0_36, %c0_37] : memref<2x8xf32, #tpu.memory_space<vmem>>, vector<2x8xf32>
    tpu.vector_store %arg13[%c0_36, %c0_37], %26 {strides = array<i32>} : memref<2x8xf32, #tpu.memory_space<vmem>>, vector<2x8xf32>,
    %c0_38 = arith.constant 0 : index
    %c0_39 = arith.constant 0 : index
    %79 = vector.load %arg14[%c0_38, %c0_39] : memref<2x1xf32, #tpu.memory_space<vmem>>, vector<2x1xf32>
    tpu.vector_store %arg14[%c0_38, %c0_39], %75 {strides = array<i32>} : memref<2x1xf32, #tpu.memory_space<vmem>>, vector<2x1xf32>,
    %80 = tpu.concatenate %64, %30 in 1 : vector<2x32xf32>, vector<2x32xf32> -> vector<2x64xf32>
    %81 = arith.truncf %80 : vector<2x64xf32> to vector<2x64xbf16>
    %c0_40 = arith.constant 0 : index
    %c0_41 = arith.constant 0 : index
    %82 = vector.load %arg15[%c0_40, %c0_41] : memref<2x64xbf16, #tpu.memory_space<vmem>>, vector<2x64xbf16>
    tpu.vector_store %arg15[%c0_40, %c0_41], %81 {strides = array<i32>} : memref<2x64xbf16, #tpu.memory_space<vmem>>, vector<2x64xbf16>,
    return
  }
}

</mosaic_0001>

<llo_original>
// kernel: tpu_custom_call.1
$region0: #{tpu_custom_call.1}
  #allocation0 [shape = 'u32[]', space=smem, size = 0x4, offset = 0x4, fixed_abs, tag = 'smem constant byte address 0x4 - core index']
  #allocation1 [shape = 'u32[72,128]{1,0:T(1,128)}', space=vmem, size = 0x9000, scoped, tag = 'internal scratch']
  #allocation2 [shape = 'f32[1,1]{1,0:T(1,128)S(1)}', space=vmem, size = 0x200, scoped, tag = 'scoped memory for tpu_custom_call.1']
  #allocation3 [shape = 'f32[1,1]{1,0:T(1,128)S(1)}', space=vmem, size = 0x200, scoped, tag = 'scoped memory for tpu_custom_call.1']
  %s0 = inlined_call_operand.vmem [shape: f32[2,16], index: 0, kind: input, shape index: {}]
  %s1 = inlined_call_operand.hbm [shape: f32[2,8,32], index: 1, kind: input, shape index: {}]
  %s2 = inlined_call_operand.vmem [shape: f32[2,32], index: 2, kind: input, shape index: {}]
  %s3 = inlined_call_operand.vmem [shape: f32[2,32], index: 3, kind: input, shape index: {}]
  %s4 = inlined_call_operand.vmem [shape: f32[1,32], index: 4, kind: input, shape index: {}]
  %s5 = inlined_call_operand.<no memory space> [shape: f32[1,1], index: 5, kind: input, shape index: {}]
  %s6 = inlined_call_operand.vmem [shape: f32[48,128], index: 6, kind: input, shape index: {}]
  %s7 = inlined_call_operand.vmem [shape: f32[32,128], index: 7, kind: input, shape index: {}]
  %s8 = inlined_call_operand.vmem [shape: f32[1,128], index: 8, kind: input, shape index: {}]
  %s9 = inlined_call_operand.vmem [shape: f32[80,1], index: 9, kind: input, shape index: {}]
  %s10 = inlined_call_operand.<no memory space> [shape: f32[1,1], index: 10, kind: input, shape index: {}]
  %s11 = inlined_call_operand.hbm [shape: f32[2,32], index: 11, kind: output, shape index: {0}]
  %s12 = inlined_call_operand.hbm [shape: f32[2,32], index: 12, kind: output, shape index: {1}]
  %s13 = inlined_call_operand.hbm [shape: f32[2,8], index: 13, kind: output, shape index: {2}]
  %s14 = inlined_call_operand.vmem [shape: f32[2,1], index: 14, kind: output, shape index: {3}]
  %s15 = inlined_call_operand.hbm [shape: bf16[2,64], index: 15, kind: output, shape index: {4}]
  %16 = xla_tuple %s11, %s12, %s13, %s14, %s15
  %s17 = sld [smem:[#allocation0]]
  $region90: #{tpu_custom_call.1} parent=0
    _
  %s19 = ssub.s32 1, %s17
  %s20 = scalar_select 0, %s19, %s17
  %v21 = vstv %s5
  %22 = vst [vmem:[#allocation2] sm:$0x1] %v21
  %v23 = vstv %s10
  %24 = vst [vmem:[#allocation3] sm:$0x1] %v23
  $region1: #{tpu_custom_call.1} parent=0
    #allocation4 [shape = 'u8[8192]{0}', space=vmem, size = 0x2000, scoped, tag = 'input window, operand 1, single buffered']
    #allocation5 [shape = 's32[1]{0}', space=sflag, size = 0x4, scoped, tag = 'scoped memory for tpu_custom_call.1']
    #allocation6 [shape = 's32[1]{0}', space=sflag, size = 0x4, scoped, tag = 'scoped memory for tpu_custom_call.1']
    #allocation7 [shape = 'u8[1024]{0}', space=vmem, size = 0x400, scoped, tag = 'output window, operand 0, single buffered']
    #allocation8 [shape = 'u8[1024]{0}', space=vmem, size = 0x400, scoped, tag = 'output window, operand 1, single buffered']
    #allocation9 [shape = 's32[1]{0}', space=sflag, size = 0x4, scoped, tag = 'scoped memory for tpu_custom_call.1']
    #allocation10 [shape = 'u8[1024]{0}', space=vmem, size = 0x400, scoped, tag = 'output window, operand 2, single buffered']
    #allocation11 [shape = 'u8[512]{0}', space=vmem, size = 0x400, scoped, tag = 'output window, operand 4, single buffered']
    #allocation12 [shape = 's32[1]{0}', space=sflag, size = 0x4, scoped, tag = 'scoped memory for tpu_custom_call.1']
    %25 = vsyncpa [#allocation5], 0
    %26 = vsyncpa [#allocation6], 0
    %27 = vsyncpa [#allocation9], 0
    %28 = vsyncpa [#allocation12], 0
    // Predicated region
    $region2: #{tpu_custom_call.1} parent=1 // pred_check
      _
    $region3: #{tpu_custom_call.1} parent=1 // pred_check_branch
      %30 = sbr.rel (0) target = $region5
    $region4: #{tpu_custom_call.1} parent=1 // pred_region
      _
    $region5: #{tpu_custom_call.1} parent=1 // pred_fallthru
      _
    // Predicated region
    $region6: #{tpu_custom_call.1} parent=1 // pred_check
      _
    $region7: #{tpu_custom_call.1} parent=1 // pred_check_branch
      %32 = sbr.rel (0) target = $region9
    $region8: #{tpu_custom_call.1} parent=1 // pred_region
      %34 = vsyncadd [#allocation5], 0
      %s35 = sshll.u32 %s1, 4
      %s36 = int_to_ptr.hbm [resolvable:$true] %s35
      %s37 = sshll.u32 [#allocation4], 4
      %s38 = int_to_ptr.vmem [resolvable:$true] %s37
      %43 = dma.hbm_to_vmem [thread:$0]  %s36, 256, %s38, [#allocation5], 128, 128, 8
    $region9: #{tpu_custom_call.1} parent=1 // pred_fallthru
      _
    // Predicated region
    $region10: #{tpu_custom_call.1} parent=1 // pred_check
      _
    $region11: #{tpu_custom_call.1} parent=1 // pred_check_branch
      %45 = sbr.rel (0) target = $region13
    $region12: #{tpu_custom_call.1} parent=1 // pred_region
      _
    $region13: #{tpu_custom_call.1} parent=1 // pred_fallthru
      _
    // Predicated region
    $region14: #{tpu_custom_call.1} parent=1 // pred_check
      _
    $region15: #{tpu_custom_call.1} parent=1 // pred_check_branch
      %47 = sbr.rel (0) target = $region17
    $region16: #{tpu_custom_call.1} parent=1 // pred_region
      _
    $region17: #{tpu_custom_call.1} parent=1 // pred_fallthru
      _
    // Predicated region
    $region18: #{tpu_custom_call.1} parent=1 // pred_check
      _
    $region19: #{tpu_custom_call.1} parent=1 // pred_check_branch
      %49 = sbr.rel (0) target = $region21
    $region20: #{tpu_custom_call.1} parent=1 // pred_region
      _
    $region21: #{tpu_custom_call.1} parent=1 // pred_fallthru
      _
    // Predicated region
    $region22: #{tpu_custom_call.1} parent=1 // pred_check
      _
    $region23: #{tpu_custom_call.1} parent=1 // pred_check_branch
      %51 = sbr.rel (0) target = $region25
    $region24: #{tpu_custom_call.1} parent=1 // pred_region
      _
    $region25: #{tpu_custom_call.1} parent=1 // pred_fallthru
      _
    // Predicated region
    $region26: #{tpu_custom_call.1} parent=1 // pred_check
      _
    $region27: #{tpu_custom_call.1} parent=1 // pred_check_branch
      %53 = sbr.rel (0) target = $region29
    $region28: #{tpu_custom_call.1} parent=1 // pred_region
      _
    $region29: #{tpu_custom_call.1} parent=1 // pred_fallthru
      _
    // Predicated region
    $region30: #{tpu_custom_call.1} parent=1 // pred_check
      _
    $region31: #{tpu_custom_call.1} parent=1 // pred_check_branch
      %55 = sbr.rel (0) target = $region33
    $region32: #{tpu_custom_call.1} parent=1 // pred_region
      _
    $region33: #{tpu_custom_call.1} parent=1 // pred_fallthru
      _
    // Predicated region
    $region34: #{tpu_custom_call.1} parent=1 // pred_check
      _
    $region35: #{tpu_custom_call.1} parent=1 // pred_check_branch
      %57 = sbr.rel (0) target = $region37
    $region36: #{tpu_custom_call.1} parent=1 // pred_region
      _
    $region37: #{tpu_custom_call.1} parent=1 // pred_fallthru
      _
    // Predicated region
    $region38: #{tpu_custom_call.1} parent=1 // pred_check
      _
    $region39: #{tpu_custom_call.1} parent=1 // pred_check_branch
      %59 = sbr.rel (0) target = $region41
    $region40: #{tpu_custom_call.1} parent=1 // pred_region
      _
    $region41: #{tpu_custom_call.1} parent=1 // pred_fallthru
      _
    // Predicated region
    $region42: #{tpu_custom_call.1} parent=1 // pred_check
      _
    $region43: #{tpu_custom_call.1} parent=1 // pred_check_branch
      %61 = sbr.rel (0) target = $region45
    $region44: #{tpu_custom_call.1} parent=1 // pred_region
      _
    $region45: #{tpu_custom_call.1} parent=1 // pred_fallthru
      _
    // Predicated region
    $region46: #{tpu_custom_call.1} parent=1 // pred_check
      _
    $region47: #{tpu_custom_call.1} parent=1 // pred_check_branch
      %63 = sbr.rel (0) target = $region49
    $region48: #{tpu_custom_call.1} parent=1 // pred_region
      %65 = dma.done [#allocation5], 256
    $region49: #{tpu_custom_call.1} parent=1 // pred_fallthru
      _
    %v66 = vld [vmem:[%s0] sm:$0x3]
    %v67 = vld [vmem:[#allocation4] sm:$0xff]
    %v68 = vld [vmem:[#allocation4 + $0x8] sm:$0xff]
    %v69 = vld [vmem:[%s2] sm:$0x3]
    %v70 = vld [vmem:[%s3] sm:$0x3]
    %v72 = vrot.slane %v69, 1
    %v73 = vperm.slane %v69, 0
    %v74 = vperm.slane %v72, 0
    %v77 = vadd.f32 %v67, %v73
    %v78 = vadd.f32 %v68, %v74
    %v79 = vtanh.pop %v77
    %v80 = vtanh.pop %v78
    %v81 = vld [vmem:[%s4] sm:$0x1]
    %v83 = vperm.slane %v81, 0
    %v85 = vmul.f32 %v79, %v83
    %v86 = vmul.f32 %v80, %v83
    %vm87 = vcmask 261120
    %v88 = vsel %vm87, %v85, 0.0
    %89 = vadd.xlane.f32.xlu0 %v88
    %v90 = vpop.xlane.xlu0 %89
    %v91 = vsel %vm87, %v86, 0.0
    %92 = vadd.xlane.f32.xlu0 %v91
    %v93 = vpop.xlane.xlu0 %92
    %v94 = vld [vmem:[#allocation2] sm:$0x1]
    %s95 = vtos %v94
    %v96 = vstv %s95
    %v97 = vadd.f32 %v90, %v96
    %v98 = vadd.f32 %v93, %v96
    %v101 = vlaneseq
    %v102 = vand.u32 %v101, 127
    %v103 = vperm.slane %v97, %v102
    %v104 = vperm.slane %v98, %v102
    %vm105 = vcmask 1041409
    %v106 = vsel %vm105, %v104, %v103
    %vm108 = vcmask 58368
    %v109 = vsel %vm108, %v106, -inf
    %110 = vmax.xlane.f32.xlu0 %v109
    %v111 = vpop.xlane.xlu0 %110
    %v113 = vperm.slane %v111, 0
    %v114 = vperm.slane %v111, 1
    %v117 = vsub.f32 %v97, %v113
    %v118 = vsub.f32 %v98, %v114
    %v119 = vmul.f32 %v117, 1.442695
    %v120 = vpow.pop %v119
    %v121 = vmul.f32 %v118, 1.442695
    %v122 = vpow.pop %v121
    %125 = vset.pattern.permute.xlu0 0
    %126 = vperm.xlu0 %125, %v120
    %v127 = vpop.permute.xlu0 %126
    %128 = vset.pattern.permute.xlu0 0
    %129 = vperm.xlu0 %128, %v122
    %v130 = vpop.permute.xlu0 %129
    %v131 = vperm.slane %v127, %v102
    %v132 = vperm.slane %v130, %v102
    %v133 = vsel %vm105, %v132, %v131
    %v135 = vsel %vm108, %v133, 0.0
    %136 = vadd.xlane.f32.xlu0 %v135
    %v137 = vpop.xlane.xlu0 %136
    %v138 = vrcp.pop %v137
    %v140 = vperm.slane %v138, 0
    %v141 = vperm.slane %v138, 1
    %v144 = vmul.f32 %v120, %v140
    %v145 = vmul.f32 %v122, %v141
    %147 = vset.pattern.permute.xlu0 0
    %148 = vperm.xlu0 %147, %v144
    %v149 = vpop.permute.xlu0 %148
    %152 = vset.pattern.permute.xlu0 0
    %153 = vperm.xlu0 %152, %v145
    %v154 = vpop.permute.xlu0 %153
    %v156 = vmul.f32 %v149, %v67
    %v157 = vmul.f32 %v154, %v68
    %v158 = vsel %vm87, %v156, 0.0
    %v159 = vrot.slane %v158, 4
    %v160 = vadd.f32 %v158, %v159
    %v161 = vrot.slane %v160, 2
    %v162 = vadd.f32 %v160, %v161
    %v163 = vrot.slane %v162, 1
    %v164 = vadd.f32 %v162, %v163
    %v165 = vsel %vm87, %v157, 0.0
    %v166 = vrot.slane %v165, 4
    %v167 = vadd.f32 %v165, %v166
    %v168 = vrot.slane %v167, 2
    %v169 = vadd.f32 %v167, %v168
    %v170 = vrot.slane %v169, 1
    %v171 = vadd.f32 %v169, %v170
    %v174 = vsel %vm105, %v171, %v164
    %175 = vrot.lane.b32.xlu0 %v174, 16
    %v176 = vpop.permute.xlu0 %175
    %vm178 = vcmask 130048
    %v179 = vsel %vm178, %v66, %v176
    %v180 = vld [vmem:[%s6] sm:$0xff]
    %v181 = vld [vmem:[%s6 + $0x8] sm:$0xff]
    %v182 = vld [vmem:[%s6 + $0x10] sm:$0xff]
    %v183 = vld [vmem:[%s6 + $0x18] sm:$0xff]
    %v184 = vld [vmem:[%s6 + $0x20] sm:$0xff]
    %v185 = vld [vmem:[%s6 + $0x28] sm:$0xff]
    %v186 = vld [vmem:[%s7] sm:$0xff]
    %v187 = vld [vmem:[%s7 + $0x8] sm:$0xff]
    %v188 = vld [vmem:[%s7 + $0x10] sm:$0xff]
    %v189 = vld [vmem:[%s7 + $0x18] sm:$0xff]
    %v190 = vsel %vm87, %v69, 0
    %192 = vmatpush.msra.mxu0 0.0
    %193 = vmatpush.msra.mxu0 0.0
    %194 = vmatpush.msra.mxu0 0.0
    %195 = vmatpush.msra.mxu0 0.0
    %196 = vmatpush.msra.mxu0 0.0
    %197 = vmatpush.msra.mxu0 0.0
    %198 = vmatpush.msra.mxu0 0.0
    %199 = vmatpush.msra.mxu0 0.0
    %200 = vmatpush.msra.mxu0 0.0
    %201 = vmatpush.msra.mxu0 0.0
    %202 = vmatpush.msra.mxu0 0.0
    %203 = vmatpush.msra.mxu0 0.0
    %204 = vmatpush.msra.mxu0 %v189
    %205 = vmatpush.msra.mxu0 %v188
    %206 = vmatpush.msra.mxu0 %v187
    %207 = vmatpush.msra.mxu0 %v186
    %208 = vmatmul.f32.gmra.mxu0 %v190
    %v209 = vpop.f32.mrf.mxu0
    %v210 = vadd.f32 0.0, %v209
    %211 = vdwg.mxu0
    %vm212 = vcmask 392192
    %v214 = vsel %vm212, %v179, 0
    %216 = vmatpush.msra.mxu0 0.0
    %217 = vmatpush.msra.mxu0 0.0
    %218 = vmatpush.msra.mxu0 0.0
    %219 = vmatpush.msra.mxu0 0.0
    %220 = vmatpush.msra.mxu0 0.0
    %221 = vmatpush.msra.mxu0 0.0
    %222 = vmatpush.msra.mxu0 0.0
    %223 = vmatpush.msra.mxu0 0.0
    %224 = vmatpush.msra.mxu0 0.0
    %225 = vmatpush.msra.mxu0 0.0
    %226 = vmatpush.msra.mxu0 %v185
    %227 = vmatpush.msra.mxu0 %v184
    %228 = vmatpush.msra.mxu0 %v183
    %229 = vmatpush.msra.mxu0 %v182
    %230 = vmatpush.msra.mxu0 %v181
    %231 = vmatpush.msra.mxu0 %v180
    %232 = vmatmul.f32.gmra.mxu0 %v214
    %v233 = vpop.f32.mrf.mxu0
    %v234 = vadd.f32 %v210, %v233
    %235 = vdwg.mxu0
    %v236 = vld [vmem:[%s8] sm:$0x1]
    %v238 = vperm.slane %v236, 0
    %v240 = vadd.f32 %v234, %v238
    %v241 = vxor.u32 %v240, 2147483648
    %v242 = vmul.f32 %v241, 1.442695
    %v243 = vpow.pop %v242
    %v244 = vadd.f32 %v243, 1.0
    %v245 = vrcp.pop %v244
    %v246 = vmul.f32 %v244, %v245
    %v247 = vsub.f32 1.0, %v246
    %v248 = vmul.f32 %v245, %v247
    %v249 = vadd.f32 %v245, %v248
    %vm250 = vweird.f32 %v244
    %vm251 = vweird.f32 %v245
    %vm252 = vmor %vm250, %vm251
    %v253 = vsel %vm252, %v245, %v249
    %v254 = vand.u32 2147483647, %v244
    %vm255 = vcmp.eq.f32.partialorder %v254, 8.507059e+37
    %v256 = vand.u32 %v244, 2147483648
    %v257 = vor.u32 1.1754944e-38, %v256
    %v258 = vsel %vm255, %v257, %v253
    %v259 = vmul.f32 1.0, %v258
    %v260 = vtanh.pop %v240
    %262 = vrot.lane.b32.xlu0 %v70, 32
    %v263 = vpop.permute.xlu0 %262
    %v265 = vmul.f32 %v259, %v263
    %267 = vrot.lane.b32.xlu0 %v260, 64
    %v268 = vpop.permute.xlu0 %267
    %v270 = vmul.f32 %v259, %v268
    %272 = vrot.lane.b32.xlu0 %v270, 32
    %v273 = vpop.permute.xlu0 %272
    %v275 = vadd.f32 %v265, %v273
    %v276 = vtanh.pop %v275
    %278 = vrot.lane.b32.xlu0 %v276, 64
    %v279 = vpop.permute.xlu0 %278
    %v281 = vmul.f32 %v259, %v279
    %284 = vrot.lane.b32.xlu0 %v281, 64
    %v285 = vpop.permute.xlu0 %284
    %288 = vrot.lane.b32.xlu0 %v66, 64
    %v289 = vpop.permute.xlu0 %288
    %v291 = vsel %vm87, %v174, %v285
    %vm292 = vcmask 523264
    %v293 = vsel %vm292, %v291, %v289
    %v294 = vld [vmem:[%s9] sm:$0xff]
    %v295 = vld [vmem:[%s9 + $0x8] sm:$0xff]
    %v296 = vld [vmem:[%s9 + $0x10] sm:$0xff]
    %v297 = vld [vmem:[%s9 + $0x18] sm:$0xff]
    %v298 = vld [vmem:[%s9 + $0x20] sm:$0xff]
    %v299 = vld [vmem:[%s9 + $0x28] sm:$0xff]
    %v300 = vld [vmem:[%s9 + $0x30] sm:$0xff]
    %v301 = vld [vmem:[%s9 + $0x38] sm:$0xff]
    %v302 = vld [vmem:[%s9 + $0x40] sm:$0xff]
    %v303 = vld [vmem:[%s9 + $0x48] sm:$0xff]
    %v304 = vld [vmem:[#allocation3] sm:$0x1]
    %v306 = vperm.slane %v304, 0
    %vm308 = vcmask 654336
    %v310 = vsel %vm308, %v293, 0
    %312 = vmatpush.msra.mxu0 0.0
    %313 = vmatpush.msra.mxu0 0.0
    %314 = vmatpush.msra.mxu0 0.0
    %315 = vmatpush.msra.mxu0 0.0
    %316 = vmatpush.msra.mxu0 0.0
    %317 = vmatpush.msra.mxu0 0.0
    %318 = vmatpush.msra.mxu0 %v303
    %319 = vmatpush.msra.mxu0 %v302
    %320 = vmatpush.msra.mxu0 %v301
    %321 = vmatpush.msra.mxu0 %v300
    %322 = vmatpush.msra.mxu0 %v299
    %323 = vmatpush.msra.mxu0 %v298
    %324 = vmatpush.msra.mxu0 %v297
    %325 = vmatpush.msra.mxu0 %v296
    %326 = vmatpush.msra.mxu0 %v295
    %327 = vmatpush.msra.mxu0 %v294
    %328 = vmatmul.f32.gmra.mxu0 %v310
    %v329 = vpop.f32.mrf.mxu0
    %v330 = vadd.f32 %v306, %v329
    %331 = vdwg.mxu0
    %v332 = vxor.u32 %v330, 2147483648
    %v333 = vmul.f32 %v332, 1.442695
    %v334 = vpow.pop %v333
    %v335 = vadd.f32 %v334, 1.0
    %v336 = vrcp.pop %v335
    %v337 = vmul.f32 %v335, %v336
    %v338 = vsub.f32 1.0, %v337
    %v339 = vmul.f32 %v336, %v338
    %v340 = vadd.f32 %v336, %v339
    %vm341 = vweird.f32 %v335
    %vm342 = vweird.f32 %v336
    %vm343 = vmor %vm341, %vm342
    %v344 = vsel %vm343, %v336, %v340
    %v345 = vand.u32 2147483647, %v335
    %vm346 = vcmp.eq.f32.partialorder %v345, 8.507059e+37
    %v347 = vand.u32 %v335, 2147483648
    %v348 = vor.u32 1.1754944e-38, %v347
    %v349 = vsel %vm346, %v348, %v344
    %v350 = vmul.f32 1.0, %v349
    %351 = vrot.lane.b32.xlu0 %v281, 32
    %v352 = vpop.permute.xlu0 %351
    %vm354 = vcmask 254976
    %355 = vst.msk [vmem:[#allocation7] sm:$0x3] %vm354, %v352
    %357 = vrot.lane.b32.xlu0 %v275, 96
    %v358 = vpop.permute.xlu0 %357
    %360 = vst.msk [vmem:[#allocation8] sm:$0x3] %vm354, %v358
    %v361 = vperm.slane %v149, %v102
    %v362 = vperm.slane %v154, %v102
    %v363 = vsel %vm105, %v362, %v361
    %365 = vst.msk [vmem:[#allocation10] sm:$0x3] %vm108, %v363
    %vm366 = vcmask 1024
    %367 = vst.msk [vmem:[%s14] sm:$0x3] %vm366, %v350
    %368 = vrot.lane.b32.xlu0 %v174, 32
    %v369 = vpop.permute.xlu0 %368
    %v371 = vsel %vm87, %v352, %v369
    %v372 = vpack.c.bf16 %v371, %v371
    %vm373 = vcmask 516096
    %374 = vst.msk [vmem:[#allocation11] sm:$0x1] %vm373, %v372
    // Predicated region
    $region50: #{tpu_custom_call.1} parent=1 // pred_check
      _
    $region51: #{tpu_custom_call.1} parent=1 // pred_check_branch
      %376 = sbr.rel (0) target = $region53
    $region52: #{tpu_custom_call.1} parent=1 // pred_region
      %378 = vsyncadd [#allocation6], 0
      %s380 = sshll.u32 [#allocation7], 4
      %s381 = int_to_ptr.vmem [resolvable:$true] %s380
      %s382 = sshll.u32 %s11, 4
      %s383 = int_to_ptr.hbm [resolvable:$true] %s382
      %385 = dma.vmem_to_hbm [thread:$0]  %s381, 32, %s383, [#allocation6]
    $region53: #{tpu_custom_call.1} parent=1 // pred_fallthru
      _
    // Predicated region
    $region54: #{tpu_custom_call.1} parent=1 // pred_check
      _
    $region55: #{tpu_custom_call.1} parent=1 // pred_check_branch
      %387 = sbr.rel (0) target = $region57
    $region56: #{tpu_custom_call.1} parent=1 // pred_region
      %389 = vsyncadd [#allocation9], 0
      %s391 = sshll.u32 [#allocation8], 4
      %s392 = int_to_ptr.vmem [resolvable:$true] %s391
      %s393 = sshll.u32 %s12, 4
      %s394 = int_to_ptr.hbm [resolvable:$true] %s393
      %396 = dma.vmem_to_hbm [thread:$0]  %s392, 32, %s394, [#allocation9]
    $region57: #{tpu_custom_call.1} parent=1 // pred_fallthru
      _
    // Predicated region
    $region58: #{tpu_custom_call.1} parent=1 // pred_check
      _
    $region59: #{tpu_custom_call.1} parent=1 // pred_check_branch
      %398 = sbr.rel (0) target = $region61
    $region60: #{tpu_custom_call.1} parent=1 // pred_region
      %400 = vsyncadd [#allocation9], 0
      %s402 = sshll.u32 [#allocation10], 4
      %s403 = int_to_ptr.vmem [resolvable:$true] %s402
      %s404 = sshll.u32 %s13, 4
      %s405 = int_to_ptr.hbm [resolvable:$true] %s404
      %407 = dma.vmem_to_hbm [thread:$0]  %s403, 32, %s405, [#allocation9]
    $region61: #{tpu_custom_call.1} parent=1 // pred_fallthru
      _
    // Predicated region
    $region62: #{tpu_custom_call.1} parent=1 // pred_check
      _
    $region63: #{tpu_custom_call.1} parent=1 // pred_check_branch
      %409 = sbr.rel (0) target = $region65
    $region64: #{tpu_custom_call.1} parent=1 // pred_region
      _
    $region65: #{tpu_custom_call.1} parent=1 // pred_fallthru
      _
    // Predicated region
    $region66: #{tpu_custom_call.1} parent=1 // pred_check
      _
    $region67: #{tpu_custom_call.1} parent=1 // pred_check_branch
      %411 = sbr.rel (0) target = $region69
    $region68: #{tpu_custom_call.1} parent=1 // pred_region
      %413 = vsyncadd [#allocation12], 0
      %s415 = sshll.u32 [#allocation11], 4
      %s416 = int_to_ptr.vmem [resolvable:$true] %s415
      %s417 = sshll.u32 %s15, 4
      %s418 = int_to_ptr.hbm [resolvable:$true] %s417
      %420 = dma.vmem_to_hbm [thread:$0]  %s416, 16, %s418, [#allocation12]
    $region69: #{tpu_custom_call.1} parent=1 // pred_fallthru
      _
    // Predicated region
    $region70: #{tpu_custom_call.1} parent=1 // pred_check
      _
    $region71: #{tpu_custom_call.1} parent=1 // pred_check_branch
      %422 = sbr.rel (0) target = $region73
    $region72: #{tpu_custom_call.1} parent=1 // pred_region
      %424 = dma.done [#allocation6], 32
    $region73: #{tpu_custom_call.1} parent=1 // pred_fallthru
      _
    // Predicated region
    $region74: #{tpu_custom_call.1} parent=1 // pred_check
      _
    $region75: #{tpu_custom_call.1} parent=1 // pred_check_branch
      %426 = sbr.rel (0) target = $region77
    $region76: #{tpu_custom_call.1} parent=1 // pred_region
      %428 = dma.done [#allocation9], 32
    $region77: #{tpu_custom_call.1} parent=1 // pred_fallthru
      _
    // Predicated region
    $region78: #{tpu_custom_call.1} parent=1 // pred_check
      _
    $region79: #{tpu_custom_call.1} parent=1 // pred_check_branch
      %430 = sbr.rel (0) target = $region81
    $region80: #{tpu_custom_call.1} parent=1 // pred_region
      %432 = dma.done [#allocation9], 32
    $region81: #{tpu_custom_call.1} parent=1 // pred_fallthru
      _
    // Predicated region
    $region82: #{tpu_custom_call.1} parent=1 // pred_check
      _
    $region83: #{tpu_custom_call.1} parent=1 // pred_check_branch
      %434 = sbr.rel (0) target = $region85
    $region84: #{tpu_custom_call.1} parent=1 // pred_region
      _
    $region85: #{tpu_custom_call.1} parent=1 // pred_fallthru
      _
    // Predicated region
    $region86: #{tpu_custom_call.1} parent=1 // pred_check
      _
    $region87: #{tpu_custom_call.1} parent=1 // pred_check_branch
      %436 = sbr.rel (0) target = $region89
    $region88: #{tpu_custom_call.1} parent=1 // pred_region
      %438 = dma.done [#allocation12], 16
    $region89: #{tpu_custom_call.1} parent=1 // pred_fallthru
      _
    %439 = vsyncpa [#allocation5], 1
    %440 = vsyncpa [#allocation6], 1
    %441 = vsyncpa [#allocation9], 1
    %442 = vsyncpa [#allocation12], 1

</llo_original>
